<compile_context>
chip_gen: v5e
topology: v5e:2x2
jax: 0.10.0
libtpu: 0.0.40
codegen_flags: <defaults>
</compile_context>

<pallas_src>
import functools

import jax
import jax.numpy as jnp
from jax.experimental import pallas as pl
from jax.experimental.pallas import tpu as pltpu


def _round_up(n, m):
    return ((n + m - 1) // m) * m


# ------------------------------- fused kernel --------------------------------
def _context_kernel(org_ref, enh_ref, w1_ref, b1_ref, w2_ref, b2_ref,
                    w3a_ref, w3b_ref, b3_ref, o_ref):
    # e1 = org @ W1^T + b1 ; e2 = enh @ W2^T + b2
    e1 = jnp.dot(org_ref[...], w1_ref[...],
                 preferred_element_type=jnp.float32) + b1_ref[...]
    e2 = jnp.dot(enh_ref[...], w2_ref[...],
                 preferred_element_type=jnp.float32) + b2_ref[...]
    # cat([e1, e2], dim=1) @ W3^T + b3  ==  e1 @ W3a^T + e2 @ W3b^T + b3
    y = (jnp.dot(e1, w3a_ref[...], preferred_element_type=jnp.float32)
         + jnp.dot(e2, w3b_ref[...], preferred_element_type=jnp.float32)
         + b3_ref[...])
    o_ref[...] = y.astype(o_ref.dtype)


def context_pallas(org, enh, params, *, block_m=128):
    """org: (N, F1), enh: (N, F2) float32 -> (N, A) float32."""
    N, F1 = org.shape
    _, F2 = enh.shape
    E = params["w1_t"].shape[1]
    A = params["b3"].shape[1]

    # Tile rows; pad N up so every tile is full and sublane-dense.
    bm = min(block_m, _round_up(N, 8))
    Np = _round_up(N, bm)
    if Np != N:
        org = jnp.pad(org, ((0, Np - N), (0, 0)))
        enh = jnp.pad(enh, ((0, Np - N), (0, 0)))
    grid = (Np // bm,)

    const = lambda i: (0, 0)  # weights/biases: same block every grid step (stay resident)

    out = pl.pallas_call(
        _context_kernel,
        out_shape=jax.ShapeDtypeStruct((Np, A), jnp.float32),
        grid=grid,
        in_specs=[
            pl.BlockSpec((bm, F1), lambda i: (i, 0)),   # org rows
            pl.BlockSpec((bm, F2), lambda i: (i, 0)),   # enh rows
            pl.BlockSpec((F1, E), const),               # W1^T
            pl.BlockSpec((1, E), const),                # b1
            pl.BlockSpec((F2, E), const),               # W2^T
            pl.BlockSpec((1, E), const),                # b2
            pl.BlockSpec((E, A), const),                # W3[:, :E]^T
            pl.BlockSpec((E, A), const),                # W3[:, E:]^T
            pl.BlockSpec((1, A), const),                # b3
        ],
        out_specs=pl.BlockSpec((bm, A), lambda i: (i, 0)),
        compiler_params=pltpu.CompilerParams(
            dimension_semantics=("parallel",)),          # rows are independent
    )(org, enh, params["w1_t"], params["b1"], params["w2_t"], params["b2"],
      params["w3a_t"], params["w3b_t"], params["b3"])

    return out[:N]


# ------------------------------ params (PyTorch-style) ------------------------
def init_params(key, org_feat, enh_feat, each_embed, all_len):
    def linear(k, fan_in, fan_out):
        bound = 1.0 / jnp.sqrt(jnp.float32(fan_in))
        k1, k2 = jax.random.split(k)
        w = jax.random.uniform(k1, (fan_out, fan_in), jnp.float32, -bound, bound)
        b = jax.random.uniform(k2, (fan_out,), jnp.float32, -bound, bound)
        return w, b

    k1, k2, k3 = jax.random.split(key, 3)
    w1, b1 = linear(k1, org_feat, each_embed)
    w2, b2 = linear(k2, enh_feat, each_embed)
    w3, b3 = linear(k3, 2 * each_embed, all_len)

    return {
        "w1_t": w1.T,                      # (F1, E)
        "b1": b1[None, :],                 # (1, E)
        "w2_t": w2.T,                      # (F2, E)
        "b2": b2[None, :],                 # (1, E)
        "w3a_t": w3[:, :each_embed].T,     # (E, A)   first half of concat
        "w3b_t": w3[:, each_embed:].T,     # (E, A)   second half of concat
        "b3": b3[None, :],                 # (1, A)
    }


@jax.jit
def context_forward(org, enh, params):
    return context_pallas(org, enh, params)


# ------------------------------ pure-JAX reference ----------------------------
def _ref_forward(org, enh, params):
    e1 = org @ params["w1_t"] + params["b1"]
    e2 = enh @ params["w2_t"] + params["b2"]
    cat = jnp.concatenate([e1, e2], axis=1)
    w3_t = jnp.concatenate([params["w3a_t"], params["w3b_t"]], axis=0)
    return cat @ w3_t + params["b3"]


if __name__ == "__main__":
    # Small shapes consistent with the module.
    N = 8                              # batch of context rows
    org_context_feat_len = 16
    enhanced_context_feat_len = 24
    context_each_embed = 32
    context_all_len = 64

    key = jax.random.PRNGKey(0)
    key, pkey, k_org, k_enh = jax.random.split(key, 4)
    params = init_params(pkey, org_context_feat_len, enhanced_context_feat_len,
                         context_each_embed, context_all_len)
    org_context = jax.random.normal(k_org, (N, org_context_feat_len), jnp.float32)
    enhanced_context = jax.random.normal(k_enh, (N, enhanced_context_feat_len), jnp.float32)

    out = context_forward(org_context, enhanced_context, params)
    out = jax.block_until_ready(out)

    ref = _ref_forward(org_context, enhanced_context, params)
    assert out.shape == (N, context_all_len)
    assert jnp.allclose(out, ref, rtol=1e-5, atol=1e-5), "Pallas kernel mismatch vs reference"

    print("KERNEL_OK")
</pallas_src>

<mosaic_0001>
module attributes {stable_mosaic.version = 11 : i64} {
  func.func @_context_kernel(%arg0: i32, %arg1: memref<8x16xf32, #tpu.memory_space<vmem>>, %arg2: memref<8x24xf32, #tpu.memory_space<vmem>>, %arg3: memref<16x32xf32, #tpu.memory_space<vmem>>, %arg4: memref<1x32xf32, #tpu.memory_space<vmem>>, %arg5: memref<24x32xf32, #tpu.memory_space<vmem>>, %arg6: memref<1x32xf32, #tpu.memory_space<vmem>>, %arg7: memref<32x64xf32, #tpu.memory_space<vmem>>, %arg8: memref<32x64xf32, #tpu.memory_space<vmem>>, %arg9: memref<1x64xf32, #tpu.memory_space<vmem>>, %arg10: memref<8x64xf32, #tpu.memory_space<vmem>>) attributes {dimension_semantics = [#tpu.dimension_semantics<parallel>], iteration_bounds = array<i64: 1>, scalar_prefetch = 0 : i64, scratch_operands = 0 : i64, tpu.core_type = #tpu.core_type<tc>, window_params = [{transform_indices = @transform_0, window_bounds = array<i64: 8, 16>}, {transform_indices = @transform_1, window_bounds = array<i64: 8, 24>}, {pipeline_mode = #tpu.pipeline_mode<synchronous>, transform_indices = @transform_2, window_bounds = array<i64: 16, 32>}, {pipeline_mode = #tpu.pipeline_mode<synchronous>, transform_indices = @transform_3, window_bounds = array<i64: 1, 32>}, {pipeline_mode = #tpu.pipeline_mode<synchronous>, transform_indices = @transform_4, window_bounds = array<i64: 24, 32>}, {pipeline_mode = #tpu.pipeline_mode<synchronous>, transform_indices = @transform_5, window_bounds = array<i64: 1, 32>}, {pipeline_mode = #tpu.pipeline_mode<synchronous>, transform_indices = @transform_6, window_bounds = array<i64: 32, 64>}, {pipeline_mode = #tpu.pipeline_mode<synchronous>, transform_indices = @transform_7, window_bounds = array<i64: 32, 64>}, {pipeline_mode = #tpu.pipeline_mode<synchronous>, transform_indices = @transform_8, window_bounds = array<i64: 1, 64>}, {transform_indices = @transform_9, window_bounds = array<i64: 8, 64>}]} {
    %c0 = arith.constant 0 : index
    %c0_0 = arith.constant 0 : index
    %0 = vector.load %arg1[%c0, %c0_0] : memref<8x16xf32, #tpu.memory_space<vmem>>, vector<8x16xf32>
    %c0_1 = arith.constant 0 : index
    %c0_2 = arith.constant 0 : index
    %1 = vector.load %arg3[%c0_1, %c0_2] : memref<16x32xf32, #tpu.memory_space<vmem>>, vector<16x32xf32>
    %cst = arith.constant dense<0.000000e+00> : vector<8x32xf32>
    %2 = tpu.matmul %0, %1, %cst {dimension_numbers = #tpu.dot_dimension_numbers<[1], [0], [0], [1], [0, 0, 1, 1], [], []>} : vector<8x16xf32>, vector<16x32xf32>, vector<8x32xf32> -> vector<8x32xf32>
    %c0_3 = arith.constant 0 : index
    %c0_4 = arith.constant 0 : index
    %3 = vector.load %arg4[%c0_3, %c0_4] : memref<1x32xf32, #tpu.memory_space<vmem>>, vector<1x32xf32>
    %4 = vector.broadcast %3 : vector<1x32xf32> to vector<8x32xf32>
    %5 = arith.addf %2, %4 : vector<8x32xf32>
    %c0_5 = arith.constant 0 : index
    %c0_6 = arith.constant 0 : index
    %6 = vector.load %arg2[%c0_5, %c0_6] : memref<8x24xf32, #tpu.memory_space<vmem>>, vector<8x24xf32>
    %c0_7 = arith.constant 0 : index
    %c0_8 = arith.constant 0 : index
    %7 = vector.load %arg5[%c0_7, %c0_8] : memref<24x32xf32, #tpu.memory_space<vmem>>, vector<24x32xf32>
    %cst_9 = arith.constant dense<0.000000e+00> : vector<8x32xf32>
    %8 = tpu.matmul %6, %7, %cst_9 {dimension_numbers = #tpu.dot_dimension_numbers<[1], [0], [0], [1], [0, 0, 1, 1], [], []>} : vector<8x24xf32>, vector<24x32xf32>, vector<8x32xf32> -> vector<8x32xf32>
    %c0_10 = arith.constant 0 : index
    %c0_11 = arith.constant 0 : index
    %9 = vector.load %arg6[%c0_10, %c0_11] : memref<1x32xf32, #tpu.memory_space<vmem>>, vector<1x32xf32>
    %10 = vector.broadcast %9 : vector<1x32xf32> to vector<8x32xf32>
    %11 = arith.addf %8, %10 : vector<8x32xf32>
    %c0_12 = arith.constant 0 : index
    %c0_13 = arith.constant 0 : index
    %12 = vector.load %arg7[%c0_12, %c0_13] : memref<32x64xf32, #tpu.memory_space<vmem>>, vector<32x64xf32>
    %cst_14 = arith.constant dense<0.000000e+00> : vector<8x64xf32>
    %13 = tpu.matmul %5, %12, %cst_14 {dimension_numbers = #tpu.dot_dimension_numbers<[1], [0], [0], [1], [0, 0, 1, 1], [], []>} : vector<8x32xf32>, vector<32x64xf32>, vector<8x64xf32> -> vector<8x64xf32>
    %c0_15 = arith.constant 0 : index
    %c0_16 = arith.constant 0 : index
    %14 = vector.load %arg8[%c0_15, %c0_16] : memref<32x64xf32, #tpu.memory_space<vmem>>, vector<32x64xf32>
    %cst_17 = arith.constant dense<0.000000e+00> : vector<8x64xf32>
    %15 = tpu.matmul %11, %14, %cst_17 {dimension_numbers = #tpu.dot_dimension_numbers<[1], [0], [0], [1], [0, 0, 1, 1], [], []>} : vector<8x32xf32>, vector<32x64xf32>, vector<8x64xf32> -> vector<8x64xf32>
    %16 = arith.addf %13, %15 : vector<8x64xf32>
    %c0_18 = arith.constant 0 : index
    %c0_19 = arith.constant 0 : index
    %17 = vector.load %arg9[%c0_18, %c0_19] : memref<1x64xf32, #tpu.memory_space<vmem>>, vector<1x64xf32>
    %18 = vector.broadcast %17 : vector<1x64xf32> to vector<8x64xf32>
    %19 = arith.addf %16, %18 : vector<8x64xf32>
    %c0_20 = arith.constant 0 : index
    %c0_21 = arith.constant 0 : index
    %20 = vector.load %arg10[%c0_20, %c0_21] : memref<8x64xf32, #tpu.memory_space<vmem>>, vector<8x64xf32>
    tpu.vector_store %arg10[%c0_20, %c0_21], %19 {strides = array<i32>} : memref<8x64xf32, #tpu.memory_space<vmem>>, vector<8x64xf32>,
    return
  }
  func.func @transform_0(%arg0: i32) -> (i32, i32) {
    %c0_i32 = arith.constant 0 : i32
    %c0_i32_0 = arith.constant 0 : i32
    return %arg0, %c0_i32 : i32, i32
  }
  func.func @transform_1(%arg0: i32) -> (i32, i32) {
    %c0_i32 = arith.constant 0 : i32
    %c0_i32_0 = arith.constant 0 : i32
    return %arg0, %c0_i32 : i32, i32
  }
  func.func @transform_2(%arg0: i32) -> (i32, i32) {
    %c0_i32 = arith.constant 0 : i32
    %c0_i32_0 = arith.constant 0 : i32
    %c0_i32_1 = arith.constant 0 : i32
    return %c0_i32, %c0_i32_0 : i32, i32
  }
  func.func @transform_3(%arg0: i32) -> (i32, i32) {
    %c0_i32 = arith.constant 0 : i32
    %c0_i32_0 = arith.constant 0 : i32
    %c0_i32_1 = arith.constant 0 : i32
    return %c0_i32, %c0_i32_0 : i32, i32
  }
  func.func @transform_4(%arg0: i32) -> (i32, i32) {
    %c0_i32 = arith.constant 0 : i32
    %c0_i32_0 = arith.constant 0 : i32
    %c0_i32_1 = arith.constant 0 : i32
    return %c0_i32, %c0_i32_0 : i32, i32
  }
  func.func @transform_5(%arg0: i32) -> (i32, i32) {
    %c0_i32 = arith.constant 0 : i32
    %c0_i32_0 = arith.constant 0 : i32
    %c0_i32_1 = arith.constant 0 : i32
    return %c0_i32, %c0_i32_0 : i32, i32
  }
  func.func @transform_6(%arg0: i32) -> (i32, i32) {
    %c0_i32 = arith.constant 0 : i32
    %c0_i32_0 = arith.constant 0 : i32
    %c0_i32_1 = arith.constant 0 : i32
    return %c0_i32, %c0_i32_0 : i32, i32
  }
  func.func @transform_7(%arg0: i32) -> (i32, i32) {
    %c0_i32 = arith.constant 0 : i32
    %c0_i32_0 = arith.constant 0 : i32
    %c0_i32_1 = arith.constant 0 : i32
    return %c0_i32, %c0_i32_0 : i32, i32
  }
  func.func @transform_8(%arg0: i32) -> (i32, i32) {
    %c0_i32 = arith.constant 0 : i32
    %c0_i32_0 = arith.constant 0 : i32
    %c0_i32_1 = arith.constant 0 : i32
    return %c0_i32, %c0_i32_0 : i32, i32
  }
  func.func @transform_9(%arg0: i32) -> (i32, i32) {
    %c0_i32 = arith.constant 0 : i32
    %c0_i32_0 = arith.constant 0 : i32
    return %arg0, %c0_i32 : i32, i32
  }
}

</mosaic_0001>

<llo_original>
// kernel: context_forward.1
$region0: #{context_forward.1}
  #allocation0 [shape = 'u32[]', space=smem, size = 0x4, offset = 0x4, fixed_abs, tag = 'smem constant byte address 0x4 - core index']
  #allocation1 [shape = 'u32[72,128]{1,0:T(1,128)}', space=vmem, size = 0x9000, scoped, tag = 'internal scratch']
  %s0 = inlined_call_operand.hbm [shape: f32[8,16], index: 0, kind: input, shape index: {}]
  %s1 = inlined_call_operand.hbm [shape: f32[8,24], index: 1, kind: input, shape index: {}]
  %s2 = inlined_call_operand.hbm [shape: f32[16,32], index: 2, kind: input, shape index: {}]
  %s3 = inlined_call_operand.vmem [shape: f32[1,32], index: 3, kind: input, shape index: {}]
  %s4 = inlined_call_operand.hbm [shape: f32[24,32], index: 4, kind: input, shape index: {}]
  %s5 = inlined_call_operand.vmem [shape: f32[1,32], index: 5, kind: input, shape index: {}]
  %s6 = inlined_call_operand.hbm [shape: f32[32,64], index: 6, kind: input, shape index: {}]
  %s7 = inlined_call_operand.hbm [shape: f32[32,64], index: 7, kind: input, shape index: {}]
  %s8 = inlined_call_operand.vmem [shape: f32[1,64], index: 8, kind: input, shape index: {}]
  %s9 = inlined_call_operand.hbm [shape: f32[8,64], index: 9, kind: output, shape index: {}]
  %s10 = sld [smem:[#allocation0]]
  $region70: #{context_forward.1} parent=0
    _
  %s12 = ssub.s32 1, %s10
  %s13 = scalar_select 0, %s12, %s10
  $region1: #{context_forward.1} parent=0
    #allocation2 [shape = 'u8[4096]{0}', space=vmem, size = 0x1000, scoped, tag = 'input window, operand 0, single buffered']
    #allocation3 [shape = 's32[1]{0}', space=sflag, size = 0x4, scoped, tag = 'scoped memory for context_forward.1']
    #allocation4 [shape = 's32[1]{0}', space=sflag, size = 0x4, scoped, tag = 'scoped memory for context_forward.1']
    #allocation5 [shape = 'u8[4096]{0}', space=vmem, size = 0x1000, scoped, tag = 'input window, operand 1, single buffered']
    #allocation6 [shape = 's32[1]{0}', space=sflag, size = 0x4, scoped, tag = 'scoped memory for context_forward.1']
    #allocation7 [shape = 'u8[8192]{0}', space=vmem, size = 0x2000, scoped, tag = 'input window, operand 2, single buffered']
    #allocation8 [shape = 'u8[12288]{0}', space=vmem, size = 0x3000, scoped, tag = 'input window, operand 4, single buffered']
    #allocation9 [shape = 's32[1]{0}', space=sflag, size = 0x4, scoped, tag = 'scoped memory for context_forward.1']
    #allocation10 [shape = 'u8[16384]{0}', space=vmem, size = 0x4000, scoped, tag = 'input window, operand 6, single buffered']
    #allocation11 [shape = 'u8[16384]{0}', space=vmem, size = 0x4000, scoped, tag = 'input window, operand 7, single buffered']
    #allocation12 [shape = 's32[1]{0}', space=sflag, size = 0x4, scoped, tag = 'scoped memory for context_forward.1']
    #allocation13 [shape = 'u8[4096]{0}', space=vmem, size = 0x1000, scoped, tag = 'output window, operand 0, single buffered']
    %14 = vsyncpa [#allocation3], 0
    %15 = vsyncpa [#allocation6], 0
    %16 = vsyncpa [#allocation9], 0
    %17 = vsyncpa [#allocation12], 0
    %18 = vsyncpa [#allocation4], 0
    // Predicated region
    $region2: #{context_forward.1} parent=1 // pred_check
      _
    $region3: #{context_forward.1} parent=1 // pred_check_branch
      %20 = sbr.rel (0) target = $region5
    $region4: #{context_forward.1} parent=1 // pred_region
      %22 = vsyncadd [#allocation3], 0
      %s24 = sshll.u32 %s0, 4
      %s25 = int_to_ptr.hbm [resolvable:$true] %s24
      %s26 = sshll.u32 [#allocation2], 4
      %s27 = int_to_ptr.vmem [resolvable:$true] %s26
      %29 = dma.hbm_to_vmem [thread:$0]  %s25, 128, %s27, [#allocation3]
    $region5: #{context_forward.1} parent=1 // pred_fallthru
      _
    // Predicated region
    $region6: #{context_forward.1} parent=1 // pred_check
      _
    $region7: #{context_forward.1} parent=1 // pred_check_branch
      %31 = sbr.rel (0) target = $region9
    $region8: #{context_forward.1} parent=1 // pred_region
      %33 = vsyncadd [#allocation6], 0
      %s35 = sshll.u32 %s1, 4
      %s36 = int_to_ptr.hbm [resolvable:$true] %s35
      %s37 = sshll.u32 [#allocation5], 4
      %s38 = int_to_ptr.vmem [resolvable:$true] %s37
      %40 = dma.hbm_to_vmem [thread:$0]  %s36, 128, %s38, [#allocation6]
    $region9: #{context_forward.1} parent=1 // pred_fallthru
      _
    // Predicated region
    $region10: #{context_forward.1} parent=1 // pred_check
      _
    $region11: #{context_forward.1} parent=1 // pred_check_branch
      %42 = sbr.rel (0) target = $region13
    $region12: #{context_forward.1} parent=1 // pred_region
      %44 = vsyncadd [#allocation6], 0
      %s45 = sshll.u32 %s2, 4
      %s46 = int_to_ptr.hbm [resolvable:$true] %s45
      %s47 = sshll.u32 [#allocation7], 4
      %s48 = int_to_ptr.vmem [resolvable:$true] %s47
      %53 = dma.hbm_to_vmem [thread:$0]  %s46, 256, %s48, [#allocation6], 128, 128, 8
    $region13: #{context_forward.1} parent=1 // pred_fallthru
      _
    // Predicated region
    $region14: #{context_forward.1} parent=1 // pred_check
      _
    $region15: #{context_forward.1} parent=1 // pred_check_branch
      %55 = sbr.rel (0) target = $region17
    $region16: #{context_forward.1} parent=1 // pred_region
      _
    $region17: #{context_forward.1} parent=1 // pred_fallthru
      _
    // Predicated region
    $region18: #{context_forward.1} parent=1 // pred_check
      _
    $region19: #{context_forward.1} parent=1 // pred_check_branch
      %57 = sbr.rel (0) target = $region21
    $region20: #{context_forward.1} parent=1 // pred_region
      %59 = vsyncadd [#allocation9], 0
      %s60 = sshll.u32 %s4, 4
      %s61 = int_to_ptr.hbm [resolvable:$true] %s60
      %s62 = sshll.u32 [#allocation8], 4
      %s63 = int_to_ptr.vmem [resolvable:$true] %s62
      %68 = dma.hbm_to_vmem [thread:$0]  %s61, 384, %s63, [#allocation9], 128, 128, 8
    $region21: #{context_forward.1} parent=1 // pred_fallthru
      _
    // Predicated region
    $region22: #{context_forward.1} parent=1 // pred_check
      _
    $region23: #{context_forward.1} parent=1 // pred_check_branch
      %70 = sbr.rel (0) target = $region25
    $region24: #{context_forward.1} parent=1 // pred_region
      _
    $region25: #{context_forward.1} parent=1 // pred_fallthru
      _
    // Predicated region
    $region26: #{context_forward.1} parent=1 // pred_check
      _
    $region27: #{context_forward.1} parent=1 // pred_check_branch
      %72 = sbr.rel (0) target = $region29
    $region28: #{context_forward.1} parent=1 // pred_region
      %74 = vsyncadd [#allocation9], 0
      %s75 = sshll.u32 %s6, 4
      %s76 = int_to_ptr.hbm [resolvable:$true] %s75
      %s77 = sshll.u32 [#allocation10], 4
      %s78 = int_to_ptr.vmem [resolvable:$true] %s77
      %83 = dma.hbm_to_vmem [thread:$0]  %s76, 512, %s78, [#allocation9], 128, 128, 8
    $region29: #{context_forward.1} parent=1 // pred_fallthru
      _
    // Predicated region
    $region30: #{context_forward.1} parent=1 // pred_check
      _
    $region31: #{context_forward.1} parent=1 // pred_check_branch
      %85 = sbr.rel (0) target = $region33
    $region32: #{context_forward.1} parent=1 // pred_region
      %87 = vsyncadd [#allocation12], 0
      %s88 = sshll.u32 %s7, 4
      %s89 = int_to_ptr.hbm [resolvable:$true] %s88
      %s90 = sshll.u32 [#allocation11], 4
      %s91 = int_to_ptr.vmem [resolvable:$true] %s90
      %96 = dma.hbm_to_vmem [thread:$0]  %s89, 512, %s91, [#allocation12], 128, 128, 8
    $region33: #{context_forward.1} parent=1 // pred_fallthru
      _
    // Predicated region
    $region34: #{context_forward.1} parent=1 // pred_check
      _
    $region35: #{context_forward.1} parent=1 // pred_check_branch
      %98 = sbr.rel (0) target = $region37
    $region36: #{context_forward.1} parent=1 // pred_region
      _
    $region37: #{context_forward.1} parent=1 // pred_fallthru
      _
    // Predicated region
    $region38: #{context_forward.1} parent=1 // pred_check
      _
    $region39: #{context_forward.1} parent=1 // pred_check_branch
      %100 = sbr.rel (0) target = $region41
    $region40: #{context_forward.1} parent=1 // pred_region
      %102 = dma.done [#allocation3], 128
    $region41: #{context_forward.1} parent=1 // pred_fallthru
      _
    // Predicated region
    $region42: #{context_forward.1} parent=1 // pred_check
      _
    $region43: #{context_forward.1} parent=1 // pred_check_branch
      %104 = sbr.rel (0) target = $region45
    $region44: #{context_forward.1} parent=1 // pred_region
      %106 = dma.done [#allocation6], 128
    $region45: #{context_forward.1} parent=1 // pred_fallthru
      _
    // Predicated region
    $region46: #{context_forward.1} parent=1 // pred_check
      _
    $region47: #{context_forward.1} parent=1 // pred_check_branch
      %108 = sbr.rel (0) target = $region49
    $region48: #{context_forward.1} parent=1 // pred_region
      %110 = dma.done [#allocation6], 256
    $region49: #{context_forward.1} parent=1 // pred_fallthru
      _
    // Predicated region
    $region50: #{context_forward.1} parent=1 // pred_check
      _
    $region51: #{context_forward.1} parent=1 // pred_check_branch
      %112 = sbr.rel (0) target = $region53
    $region52: #{context_forward.1} parent=1 // pred_region
      %114 = dma.done [#allocation9], 384
    $region53: #{context_forward.1} parent=1 // pred_fallthru
      _
    // Predicated region
    $region54: #{context_forward.1} parent=1 // pred_check
      _
    $region55: #{context_forward.1} parent=1 // pred_check_branch
      %116 = sbr.rel (0) target = $region57
    $region56: #{context_forward.1} parent=1 // pred_region
      %118 = dma.done [#allocation9], 512
    $region57: #{context_forward.1} parent=1 // pred_fallthru
      _
    // Predicated region
    $region58: #{context_forward.1} parent=1 // pred_check
      _
    $region59: #{context_forward.1} parent=1 // pred_check_branch
      %120 = sbr.rel (0) target = $region61
    $region60: #{context_forward.1} parent=1 // pred_region
      %122 = dma.done [#allocation12], 512
    $region61: #{context_forward.1} parent=1 // pred_fallthru
      _
    %v123 = vld [vmem:[#allocation2] sm:$0xff]
    %v124 = vld [vmem:[#allocation7] sm:$0xff]
    %v125 = vld [vmem:[#allocation7 + $0x8] sm:$0xff]
    %v126 = vld [vmem:[%s3] sm:$0x1]
    %v128 = vperm.slane %v126, 0
    %vm130 = vcmask 130048
    %v132 = vsel %vm130, %v123, 0
    %134 = vmatpush.msra.mxu0 0.0
    %135 = vmatpush.msra.mxu0 0.0
    %136 = vmatpush.msra.mxu0 0.0
    %137 = vmatpush.msra.mxu0 0.0
    %138 = vmatpush.msra.mxu0 0.0
    %139 = vmatpush.msra.mxu0 0.0
    %140 = vmatpush.msra.mxu0 0.0
    %141 = vmatpush.msra.mxu0 0.0
    %142 = vmatpush.msra.mxu0 0.0
    %143 = vmatpush.msra.mxu0 0.0
    %144 = vmatpush.msra.mxu0 0.0
    %145 = vmatpush.msra.mxu0 0.0
    %146 = vmatpush.msra.mxu0 0.0
    %147 = vmatpush.msra.mxu0 0.0
    %148 = vmatpush.msra.mxu0 %v125
    %149 = vmatpush.msra.mxu0 %v124
    %150 = vmatmul.f32.gmra.mxu0 %v132
    %v151 = vpop.f32.mrf.mxu0
    %v152 = vadd.f32 %v128, %v151
    %153 = vdwg.mxu0
    %v154 = vld [vmem:[#allocation5] sm:$0xff]
    %v155 = vld [vmem:[#allocation8] sm:$0xff]
    %v156 = vld [vmem:[#allocation8 + $0x8] sm:$0xff]
    %v157 = vld [vmem:[#allocation8 + $0x10] sm:$0xff]
    %v158 = vld [vmem:[%s5] sm:$0x1]
    %v160 = vperm.slane %v158, 0
    %vm162 = vcmask 195584
    %v164 = vsel %vm162, %v154, 0
    %166 = vmatpush.msra.mxu0 0.0
    %167 = vmatpush.msra.mxu0 0.0
    %168 = vmatpush.msra.mxu0 0.0
    %169 = vmatpush.msra.mxu0 0.0
    %170 = vmatpush.msra.mxu0 0.0
    %171 = vmatpush.msra.mxu0 0.0
    %172 = vmatpush.msra.mxu0 0.0
    %173 = vmatpush.msra.mxu0 0.0
    %174 = vmatpush.msra.mxu0 0.0
    %175 = vmatpush.msra.mxu0 0.0
    %176 = vmatpush.msra.mxu0 0.0
    %177 = vmatpush.msra.mxu0 0.0
    %178 = vmatpush.msra.mxu0 0.0
    %179 = vmatpush.msra.mxu0 %v157
    %180 = vmatpush.msra.mxu0 %v156
    %181 = vmatpush.msra.mxu0 %v155
    %182 = vmatmul.f32.gmra.mxu0 %v164
    %v183 = vpop.f32.mrf.mxu0
    %v184 = vadd.f32 %v160, %v183
    %185 = vdwg.mxu0
    %v186 = vld [vmem:[#allocation10] sm:$0xff]
    %v187 = vld [vmem:[#allocation10 + $0x8] sm:$0xff]
    %v188 = vld [vmem:[#allocation10 + $0x10] sm:$0xff]
    %v189 = vld [vmem:[#allocation10 + $0x18] sm:$0xff]
    %v190 = vld [vmem:[#allocation11] sm:$0xff]
    %v191 = vld [vmem:[#allocation11 + $0x8] sm:$0xff]
    %v192 = vld [vmem:[#allocation11 + $0x10] sm:$0xff]
    %v193 = vld [vmem:[#allocation11 + $0x18] sm:$0xff]
    %vm194 = vcmask 261120
    %v196 = vsel %vm194, %v184, 0
    %198 = vmatpush.msra.mxu0 0.0
    %199 = vmatpush.msra.mxu0 0.0
    %200 = vmatpush.msra.mxu0 0.0
    %201 = vmatpush.msra.mxu0 0.0
    %202 = vmatpush.msra.mxu0 0.0
    %203 = vmatpush.msra.mxu0 0.0
    %204 = vmatpush.msra.mxu0 0.0
    %205 = vmatpush.msra.mxu0 0.0
    %206 = vmatpush.msra.mxu0 0.0
    %207 = vmatpush.msra.mxu0 0.0
    %208 = vmatpush.msra.mxu0 0.0
    %209 = vmatpush.msra.mxu0 0.0
    %210 = vmatpush.msra.mxu0 %v193
    %211 = vmatpush.msra.mxu0 %v192
    %212 = vmatpush.msra.mxu0 %v191
    %213 = vmatpush.msra.mxu0 %v190
    %214 = vmatmul.f32.gmra.mxu0 %v196
    %v215 = vpop.f32.mrf.mxu0
    %v216 = vadd.f32 0.0, %v215
    %217 = vdwg.mxu0
    %v219 = vsel %vm194, %v152, 0
    %221 = vmatpush.msra.mxu0 0.0
    %222 = vmatpush.msra.mxu0 0.0
    %223 = vmatpush.msra.mxu0 0.0
    %224 = vmatpush.msra.mxu0 0.0
    %225 = vmatpush.msra.mxu0 0.0
    %226 = vmatpush.msra.mxu0 0.0
    %227 = vmatpush.msra.mxu0 0.0
    %228 = vmatpush.msra.mxu0 0.0
    %229 = vmatpush.msra.mxu0 0.0
    %230 = vmatpush.msra.mxu0 0.0
    %231 = vmatpush.msra.mxu0 0.0
    %232 = vmatpush.msra.mxu0 0.0
    %233 = vmatpush.msra.mxu0 %v189
    %234 = vmatpush.msra.mxu0 %v188
    %235 = vmatpush.msra.mxu0 %v187
    %236 = vmatpush.msra.mxu0 %v186
    %237 = vmatmul.f32.gmra.mxu0 %v219
    %v238 = vpop.f32.mrf.mxu0
    %v239 = vadd.f32 %v216, %v238
    %240 = vdwg.mxu0
    %v241 = vld [vmem:[%s8] sm:$0x1]
    %v243 = vperm.slane %v241, 0
    %v245 = vadd.f32 %v239, %v243
    %vm246 = vcmask 523264
    %247 = vst.msk [vmem:[#allocation13] sm:$0xff] %vm246, %v245
    // Predicated region
    $region62: #{context_forward.1} parent=1 // pred_check
      _
    $region63: #{context_forward.1} parent=1 // pred_check_branch
      %249 = sbr.rel (0) target = $region65
    $region64: #{context_forward.1} parent=1 // pred_region
      %251 = vsyncadd [#allocation4], 0
      %s253 = sshll.u32 [#allocation13], 4
      %s254 = int_to_ptr.vmem [resolvable:$true] %s253
      %s255 = sshll.u32 %s9, 4
      %s256 = int_to_ptr.hbm [resolvable:$true] %s255
      %258 = dma.vmem_to_hbm [thread:$0]  %s254, 128, %s256, [#allocation4]
    $region65: #{context_forward.1} parent=1 // pred_fallthru
      _
    // Predicated region
    $region66: #{context_forward.1} parent=1 // pred_check
      _
    $region67: #{context_forward.1} parent=1 // pred_check_branch
      %260 = sbr.rel (0) target = $region69
    $region68: #{context_forward.1} parent=1 // pred_region
      %262 = dma.done [#allocation4], 128
    $region69: #{context_forward.1} parent=1 // pred_fallthru
      _
    %263 = vsyncpa [#allocation3], 1
    %264 = vsyncpa [#allocation6], 1
    %265 = vsyncpa [#allocation9], 1
    %266 = vsyncpa [#allocation12], 1
    %267 = vsyncpa [#allocation4], 1

</llo_original>
